<compile_context>
chip_gen: v5e
topology: v5e:2x2
jax: 0.10.0
libtpu: 0.0.40
codegen_flags: <defaults>
</compile_context>

<pallas_src>
import math
import numpy as np
import jax
import jax.numpy as jnp
from jax.experimental import pallas as pl
from jax.experimental.pallas import tpu as pltpu


def _round_up(a, b):
    return (a + b - 1) // b * b


def _make_cos_pi_coeffs(n_terms=10):
    # cos(pi*u) = sum_k (-1)^k pi^(2k)/(2k)! * (u^2)^k ; truncation after k=9
    # is < 4e-9 for |u| <= 1, f32 Horner roundoff ~1e-6.
    return tuple(
        float(np.float32((-1.0) ** k * math.pi ** (2 * k) / math.factorial(2 * k)))
        for k in range(n_terms))


_COS_PI_COEFFS = _make_cos_pi_coeffs()


def _posenc_kernel(x_ref, w_ref, b_ref, out_ref):
    # x_ref:   (tile, p*d)  packed coordinates (p logical rows per physical row)
    # w_ref:   (p*d, p*C)   block-diagonal "spread" matrix, entries 2^f (exact)
    # b_ref:   (1, p*C)     0.0 on cos channels, 0.5 on sin channels
    # out_ref: (tile, p*C)
    # y[n, c] = 2^f(c) * x_k(c): exact (one power-of-two term per column).
    y = jnp.dot(x_ref[...], w_ref[...], preferred_element_type=jnp.float32)
    # Exact range reduction: r = y mod 2 in [0, 2) (cos/sin have period 2 in y).
    r = y - 2.0 * jnp.floor(0.5 * y)
    # sin(pi*y) == cos(pi*(y - 1/2)); the 1/2 shift is applied at |r| < 2, so no
    # large-phase cancellation.  Re-center to u in [-1, 1).
    u = r - b_ref[...]
    u = jnp.where(u >= 1.0, u - 2.0, u)
    # Even polynomial for cos(pi*u), |u| <= 1 (pure VPU, no transcendental unit).
    s = u * u
    acc = _COS_PI_COEFFS[-1] * s + _COS_PI_COEFFS[-2]
    for c in _COS_PI_COEFFS[-3::-1]:
        acc = acc * s + c
    out_ref[...] = acc.astype(out_ref.dtype)


def positional_encoding(x, num_frequencies, *, tile_rows=8192, min_steps=8,
                        out_dtype=jnp.float32):
    """Pallas equivalent of PositionalEncoding.forward(x)."""
    *lead, d = x.shape
    F = int(num_frequencies)
    C = 2 * F * d                                    # output_channels
    N = int(np.prod(lead)) if lead else 1

    # ---- minimal lane-dense packing: smallest p with (p*C) % 128 == 0 ----
    p = 128 // math.gcd(C, 128)
    pd, pC = p * d, p * C

    # ---- constant operands (replicated across the grid) ----
    col = np.arange(pC)
    cc = col % C                                     # channel within a logical row
    j = col // C                                     # packed logical sub-row
    within = cc % (2 * d)
    f_of_c = cc // (2 * d)
    k_of_c = within % d
    is_sin = within >= d
    W = np.zeros((pd, pC), dtype=np.float32)
    W[j * d + k_of_c, col] = np.ldexp(1.0, f_of_c).astype(np.float32)   # 2^f, exact
    bias = np.where(is_sin, 0.5, 0.0).astype(np.float32).reshape(1, pC)

    # ---- pack rows (pure reshape when N % p == 0; tiny pad otherwise) ----
    x2 = x.reshape(N, d).astype(jnp.float32)
    rem = N % p
    if rem:
        x2 = jnp.pad(x2, ((0, p - rem), (0, 0)))
    x_packed = x2.reshape(-1, pd)
    n_rows = x_packed.shape[0]

    # ---- row tiling: ~2 MiB output blocks, >= min_steps steps, even count ----
    min_tile = 8
    out_itemsize = np.dtype(out_dtype).itemsize
    if n_rows <= min_tile:
        tile, n_tiles = n_rows, 1
    else:
        target_block_bytes = 2 * 1024 * 1024
        row_cap = max(min_tile, target_block_bytes // (pC * out_itemsize))
        row_cap = min(int(tile_rows), row_cap)
        row_cap = max(min_tile, row_cap - row_cap % min_tile)
        steps = max(pl.cdiv(n_rows, row_cap),
                    min(int(min_steps), pl.cdiv(n_rows, min_tile)))
        if steps > 1 and steps % 2:
            steps += 1                                # even split over v7x's 2 TCs
        tile = max(min_tile, _round_up(pl.cdiv(n_rows, steps), min_tile))
        n_tiles = pl.cdiv(n_rows, tile)

    cost = pl.CostEstimate(
        flops=n_rows * pC * (2 * pd + 2 * len(_COS_PI_COEFFS) + 8),
        transcendentals=0,
        bytes_accessed=4 * (n_rows * pd + pd * pC + pC)
                       + out_itemsize * n_rows * pC,
    )

    out = pl.pallas_call(
        _posenc_kernel,
        out_shape=jax.ShapeDtypeStruct((n_rows, pC), out_dtype),
        grid=(n_tiles,),
        in_specs=[
            pl.BlockSpec((tile, pd), lambda i: (i, 0)),
            pl.BlockSpec((pd, pC), lambda i: (0, 0)),    # replicated constants
            pl.BlockSpec((1, pC), lambda i: (0, 0)),     # replicated constants
        ],
        out_specs=pl.BlockSpec((tile, pC), lambda i: (i, 0)),
        compiler_params=pltpu.CompilerParams(
            dimension_semantics=("parallel",),
            vmem_limit_bytes=32 * 1024 * 1024,
        ),
        cost_estimate=cost,
    )(x_packed, jnp.asarray(W), jnp.asarray(bias))

    # unpack: (n_rows, p*C) row-major == (n_rows*p, C); drop pad rows if any
    if rem:
        out = out.reshape(n_rows * p, C)[:N]
    return out.reshape(*lead, C)


if __name__ == "__main__":
    domain_dim = 2
    num_frequencies = 8                              # output_channels = 32
    key = jax.random.PRNGKey(0)
    # the 15 keeps torch's intermediate .view(-1, 2Fd - d) valid for this shape
    x = jax.random.normal(key, (2, 15, 16, domain_dim), dtype=jnp.float32)

    out = positional_encoding(x, num_frequencies)
    out = jax.block_until_ready(out)

    # float64 ground truth of the module's math.  The kernel's exact mod-2
    # reduction keeps it within ~3e-6 of this truth for any num_frequencies
    # (the f32 torch forward itself deviates by up to ~2e-4 at the top octave
    # because it rounds the large phase 2^f*pi*x once in f32).
    xh = np.asarray(x).astype(np.float64).reshape(-1, domain_dim)
    freqs = np.array([2.0 ** i * np.pi for i in range(num_frequencies)],
                     dtype=np.float64)
    ph = np.einsum('f,nd->nfd', freqs, xh)
    ref = np.concatenate((np.cos(ph), np.sin(ph)), axis=2)
    ref = ref.reshape(*x.shape[:-1], -1)

    assert out.shape == ref.shape, (out.shape, ref.shape)
    max_err = float(np.max(np.abs(np.asarray(out, dtype=np.float64) - ref)))
    assert max_err < 1e-4, max_err
    print("KERNEL_OK")
</pallas_src>

<mosaic_0001>
module attributes {stable_mosaic.version = 11 : i64} {
  func.func @_posenc_kernel(%arg0: i32, %arg1: memref<16x8xf32, #tpu.memory_space<vmem>>, %arg2: memref<8x128xf32, #tpu.memory_space<vmem>>, %arg3: memref<1x128xf32, #tpu.memory_space<vmem>>, %arg4: memref<16x128xf32, #tpu.memory_space<vmem>>) attributes {dimension_semantics = [#tpu.dimension_semantics<parallel>], iteration_bounds = array<i64: 8>, scalar_prefetch = 0 : i64, scratch_operands = 0 : i64, tpu.core_type = #tpu.core_type<tc>, window_params = [{transform_indices = @transform_0, window_bounds = array<i64: 16, 8>}, {pipeline_mode = #tpu.pipeline_mode<synchronous>, transform_indices = @transform_1, window_bounds = array<i64: 8, 128>}, {pipeline_mode = #tpu.pipeline_mode<synchronous>, transform_indices = @transform_2, window_bounds = array<i64: 1, 128>}, {transform_indices = @transform_3, window_bounds = array<i64: 16, 128>}]} {
    %c0 = arith.constant 0 : index
    %c0_0 = arith.constant 0 : index
    %0 = vector.load %arg1[%c0, %c0_0] : memref<16x8xf32, #tpu.memory_space<vmem>>, vector<16x8xf32>
    %c0_1 = arith.constant 0 : index
    %c0_2 = arith.constant 0 : index
    %1 = vector.load %arg2[%c0_1, %c0_2] : memref<8x128xf32, #tpu.memory_space<vmem>>, vector<8x128xf32>
    %cst = arith.constant dense<0.000000e+00> : vector<16x128xf32>
    %2 = tpu.matmul %0, %1, %cst {dimension_numbers = #tpu.dot_dimension_numbers<[1], [0], [0], [1], [0, 0, 1, 1], [], []>} : vector<16x8xf32>, vector<8x128xf32>, vector<16x128xf32> -> vector<16x128xf32>
    %cst_3 = arith.constant 5.000000e-01 : f32
    %3 = vector.broadcast %cst_3 : f32 to vector<16x128xf32>
    %4 = arith.mulf %3, %2 : vector<16x128xf32>
    %5 = math.floor %4 : vector<16x128xf32>
    %cst_4 = arith.constant 2.000000e+00 : f32
    %6 = vector.broadcast %cst_4 : f32 to vector<16x128xf32>
    %7 = arith.mulf %6, %5 : vector<16x128xf32>
    %8 = arith.subf %2, %7 : vector<16x128xf32>
    %c0_5 = arith.constant 0 : index
    %c0_6 = arith.constant 0 : index
    %9 = vector.load %arg3[%c0_5, %c0_6] : memref<1x128xf32, #tpu.memory_space<vmem>>, vector<1x128xf32>
    %10 = vector.broadcast %9 : vector<1x128xf32> to vector<16x128xf32>
    %11 = arith.subf %8, %10 : vector<16x128xf32>
    %cst_7 = arith.constant 1.000000e+00 : f32
    %12 = vector.broadcast %cst_7 : f32 to vector<16x128xf32>
    %13 = arith.cmpf oge, %11, %12 : vector<16x128xf32>
    %cst_8 = arith.constant 2.000000e+00 : f32
    %14 = vector.broadcast %cst_8 : f32 to vector<16x128xf32>
    %15 = arith.subf %11, %14 : vector<16x128xf32>
    %16 = arith.select %13, %15, %11 : vector<16x128xi1>, vector<16x128xf32>
    %17 = arith.mulf %16, %16 : vector<16x128xf32>
    %cst_9 = arith.constant -1.38789531E-7 : f32
    %18 = vector.broadcast %cst_9 : f32 to vector<16x128xf32>
    %19 = arith.mulf %18, %17 : vector<16x128xf32>
    %cst_10 = arith.constant 4.30306955E-6 : f32
    %20 = vector.broadcast %cst_10 : f32 to vector<16x128xf32>
    %21 = arith.addf %19, %20 : vector<16x128xf32>
    %22 = arith.mulf %21, %17 : vector<16x128xf32>
    %cst_11 = arith.constant -1.04638108E-4 : f32
    %23 = vector.broadcast %cst_11 : f32 to vector<16x128xf32>
    %24 = arith.addf %22, %23 : vector<16x128xf32>
    %25 = arith.mulf %24, %17 : vector<16x128xf32>
    %cst_12 = arith.constant 0.0019295743 : f32
    %26 = vector.broadcast %cst_12 : f32 to vector<16x128xf32>
    %27 = arith.addf %25, %26 : vector<16x128xf32>
    %28 = arith.mulf %27, %17 : vector<16x128xf32>
    %cst_13 = arith.constant -0.0258068908 : f32
    %29 = vector.broadcast %cst_13 : f32 to vector<16x128xf32>
    %30 = arith.addf %28, %29 : vector<16x128xf32>
    %31 = arith.mulf %30, %17 : vector<16x128xf32>
    %cst_14 = arith.constant 0.235330626 : f32
    %32 = vector.broadcast %cst_14 : f32 to vector<16x128xf32>
    %33 = arith.addf %31, %32 : vector<16x128xf32>
    %34 = arith.mulf %33, %17 : vector<16x128xf32>
    %cst_15 = arith.constant -1.33526278 : f32
    %35 = vector.broadcast %cst_15 : f32 to vector<16x128xf32>
    %36 = arith.addf %34, %35 : vector<16x128xf32>
    %37 = arith.mulf %36, %17 : vector<16x128xf32>
    %cst_16 = arith.constant 4.05871201 : f32
    %38 = vector.broadcast %cst_16 : f32 to vector<16x128xf32>
    %39 = arith.addf %37, %38 : vector<16x128xf32>
    %40 = arith.mulf %39, %17 : vector<16x128xf32>
    %cst_17 = arith.constant -4.93480206 : f32
    %41 = vector.broadcast %cst_17 : f32 to vector<16x128xf32>
    %42 = arith.addf %40, %41 : vector<16x128xf32>
    %43 = arith.mulf %42, %17 : vector<16x128xf32>
    %cst_18 = arith.constant 1.000000e+00 : f32
    %44 = vector.broadcast %cst_18 : f32 to vector<16x128xf32>
    %45 = arith.addf %43, %44 : vector<16x128xf32>
    %c0_19 = arith.constant 0 : index
    %c0_20 = arith.constant 0 : index
    %46 = vector.load %arg4[%c0_19, %c0_20] : memref<16x128xf32, #tpu.memory_space<vmem>>, vector<16x128xf32>
    tpu.vector_store %arg4[%c0_19, %c0_20], %45 {strides = array<i32>} : memref<16x128xf32, #tpu.memory_space<vmem>>, vector<16x128xf32>,
    return
  }
  func.func @transform_0(%arg0: i32) -> (i32, i32) {
    %c0_i32 = arith.constant 0 : i32
    %c0_i32_0 = arith.constant 0 : i32
    return %arg0, %c0_i32 : i32, i32
  }
  func.func @transform_1(%arg0: i32) -> (i32, i32) {
    %c0_i32 = arith.constant 0 : i32
    %c0_i32_0 = arith.constant 0 : i32
    %c0_i32_1 = arith.constant 0 : i32
    return %c0_i32, %c0_i32_0 : i32, i32
  }
  func.func @transform_2(%arg0: i32) -> (i32, i32) {
    %c0_i32 = arith.constant 0 : i32
    %c0_i32_0 = arith.constant 0 : i32
    %c0_i32_1 = arith.constant 0 : i32
    return %c0_i32, %c0_i32_0 : i32, i32
  }
  func.func @transform_3(%arg0: i32) -> (i32, i32) {
    %c0_i32 = arith.constant 0 : i32
    %c0_i32_0 = arith.constant 0 : i32
    return %arg0, %c0_i32 : i32, i32
  }
}

</mosaic_0001>

<llo_original>
// kernel: tpu_custom_call.1
$region0: #{tpu_custom_call.1}
  #allocation0 [shape = 'u32[]', space=smem, size = 0x4, offset = 0x4, fixed_abs, tag = 'smem constant byte address 0x4 - core index']
  #allocation1 [shape = 'u32[72,128]{1,0:T(1,128)}', space=vmem, size = 0x9000, scoped, tag = 'internal scratch']
  %s0 = inlined_call_operand.vmem [shape: f32[120,8], index: 0, kind: input, shape index: {}]
  %s1 = inlined_call_operand.vmem [shape: f32[8,128], index: 1, kind: input, shape index: {}]
  %s2 = inlined_call_operand.vmem [shape: f32[1,128], index: 2, kind: input, shape index: {}]
  %s3 = inlined_call_operand.hbm [shape: f32[120,128], index: 3, kind: output, shape index: {}]
  %s4 = sld [smem:[#allocation0]]
  $region45: #{tpu_custom_call.1} parent=0
    _
  %s6 = ssub.s32 1, %s4
  %s7 = scalar_select 0, %s6, %s4
  $region1: #{tpu_custom_call.1} parent=0
    #allocation2 [shape = 'u8[16384]{0}', space=vmem, size = 0x4000, scoped, tag = 'output window, operand 0']
    #allocation3 [shape = 's32[2]{0}', space=sflag, size = 0x8, scoped, tag = 'scoped memory for tpu_custom_call.1']
    %8 = vsyncpa [#allocation3], 0
    %s9 = scalar_lea.sflag [#allocation3], 1
    %10 = vsyncpa %s9, 0
    loop: start=0, step=1, limit=10
    $region2: #{tpu_custom_call.1} parent=1 // loop_pre_header
      _
    $region3: #{tpu_custom_call.1} parent=1 // loop_header
      %s12 = sphi 0, %s16
      %p13 = scmp.ge.s32.totalorder %s12, 10
      %s22 = sphi 0, %s24
      %s25 = sphi 0, %s22
      %s26 = sphi 0, %s25
      %s42 = sphi 0, %s26
      %s46 = sphi 0, %s46
      %s48 = sphi 0, %s46
      %s49 = sphi 0, %s48
      %s63 = sphi 0, %s49
      %s67 = sphi 0, %s67
      %s69 = sphi 0, %s67
      %s70 = sphi 0, %s69
      %s84 = sphi 0, %s70
      %s90 = sphi 0, %s92
      %s93 = sphi 0, %s90
      %s94 = sphi 0, %s93
      %s110 = sphi 0, %s94
    $region4: #{tpu_custom_call.1} parent=1 // loop_header_branch
      %15 = sbr.rel (%p13) target = $region8
    $region5: #{tpu_custom_call.1} parent=1 // loop_body
      %s17 = ssub.s32 %s12, 1
      %s18 = ssub.s32 %s12, 2
      %s19 = sadd.s32 %s12, 1
      %s20 = ssub.s32 %s12, %s19
      %p21 = scmp.eq.s32.totalorder %s20, 0
      %s23 = sadd.s32 %s22, 1
      %s24 = scalar_select %p21, %s22, %s23
      %p27 = pneg %p21
      %p28 = scmp.eq.s32.totalorder %s12, 7
      %p29 = por %p27, %p28
      %p30 = scmp.ne.s32.totalorder %s22, %s25
      %p31 = scmp.eq.s32.totalorder %s12, 0
      %p32 = por %p30, %p31
      %p33 = scmp.ne.s32.totalorder %s22, %s25
      %p34 = scmp.eq.s32.totalorder %s17, 7
      %p35 = por %p33, %p34
      %p36 = scmp.ne.s32.totalorder %s25, %s26
      %p37 = scmp.eq.s32.totalorder %s17, 0
      %p38 = por %p36, %p37
      %p39 = scmp.ne.s32.totalorder %s25, %s26
      %p40 = scmp.eq.s32.totalorder %s18, 7
      %p41 = por %p39, %p40
      %p43 = scmp.ne.s32.totalorder %s26, %s42
      %p44 = scmp.eq.s32.totalorder %s18, 0
      %p45 = por %p43, %p44
      %s47 = sadd.s32 %s46, 1
      %p50 = scmp.eq.s32.totalorder %s12, 7
      %p51 = scmp.ne.s32.totalorder %s46, %s48
      %p52 = scmp.eq.s32.totalorder %s12, 0
      %p53 = por %p51, %p52
      %p54 = scmp.ne.s32.totalorder %s46, %s48
      %p55 = scmp.eq.s32.totalorder %s17, 7
      %p56 = por %p54, %p55
      %p57 = scmp.ne.s32.totalorder %s48, %s49
      %p58 = scmp.eq.s32.totalorder %s17, 0
      %p59 = por %p57, %p58
      %p60 = scmp.ne.s32.totalorder %s48, %s49
      %p61 = scmp.eq.s32.totalorder %s18, 7
      %p62 = por %p60, %p61
      %p64 = scmp.ne.s32.totalorder %s49, %s63
      %p65 = scmp.eq.s32.totalorder %s18, 0
      %p66 = por %p64, %p65
      %s68 = sadd.s32 %s67, 1
      %p71 = scmp.eq.s32.totalorder %s12, 7
      %p72 = scmp.ne.s32.totalorder %s67, %s69
      %p73 = scmp.eq.s32.totalorder %s12, 0
      %p74 = por %p72, %p73
      %p75 = scmp.ne.s32.totalorder %s67, %s69
      %p76 = scmp.eq.s32.totalorder %s17, 7
      %p77 = por %p75, %p76
      %p78 = scmp.ne.s32.totalorder %s69, %s70
      %p79 = scmp.eq.s32.totalorder %s17, 0
      %p80 = por %p78, %p79
      %p81 = scmp.ne.s32.totalorder %s69, %s70
      %p82 = scmp.eq.s32.totalorder %s18, 7
      %p83 = por %p81, %p82
      %p85 = scmp.ne.s32.totalorder %s70, %s84
      %p86 = scmp.eq.s32.totalorder %s18, 0
      %p87 = por %p85, %p86
      %s88 = ssub.s32 %s12, %s19
      %p89 = scmp.eq.s32.totalorder %s88, 0
      %s91 = sadd.s32 %s90, 1
      %s92 = scalar_select %p89, %s90, %s91
      %p95 = pneg %p89
      %p96 = scmp.eq.s32.totalorder %s12, 7
      %p97 = por %p95, %p96
      %p98 = scmp.ne.s32.totalorder %s90, %s93
      %p99 = scmp.eq.s32.totalorder %s12, 0
      %p100 = por %p98, %p99
      %p101 = scmp.ne.s32.totalorder %s90, %s93
      %p102 = scmp.eq.s32.totalorder %s17, 7
      %p103 = por %p101, %p102
      %p104 = scmp.ne.s32.totalorder %s93, %s94
      %p105 = scmp.eq.s32.totalorder %s17, 0
      %p106 = por %p104, %p105
      %p107 = scmp.ne.s32.totalorder %s93, %s94
      %p108 = scmp.eq.s32.totalorder %s18, 7
      %p109 = por %p107, %p108
      %p111 = scmp.ne.s32.totalorder %s94, %s110
      %p112 = scmp.eq.s32.totalorder %s18, 0
      %p113 = por %p111, %p112
      %p114 = scmp.le.s32.totalorder 1, %s12
      %p115 = scmp.lt.s32.totalorder %s12, 9
      %p116 = pnand %p114, %p115
      %p117 = pneg %p116
      // Predicated region
      $region9: #{tpu_custom_call.1} parent=5 // pred_check
        _
      $region10: #{tpu_custom_call.1} parent=5 // pred_check_branch
        %119 = sbr.rel (%p116) target = $region12
      $region11: #{tpu_custom_call.1} parent=5 // pred_region
        %s120 = ssub.s32 %s12, 1
        // Predicated region
        $region13: #{tpu_custom_call.1} parent=11 // pred_check
          %p121 = pneg %p59
        $region14: #{tpu_custom_call.1} parent=11 // pred_check_branch
          %123 = sbr.rel (%p121) target = $region16
        $region15: #{tpu_custom_call.1} parent=11 // pred_region
          _
        $region16: #{tpu_custom_call.1} parent=11 // pred_fallthru
          _
        // Predicated region
        $region17: #{tpu_custom_call.1} parent=11 // pred_check
          %p124 = pneg %p80
        $region18: #{tpu_custom_call.1} parent=11 // pred_check_branch
          %126 = sbr.rel (%p124) target = $region20
        $region19: #{tpu_custom_call.1} parent=11 // pred_region
          _
        $region20: #{tpu_custom_call.1} parent=11 // pred_fallthru
          _
      $region12: #{tpu_custom_call.1} parent=5 // pred_fallthru
        _
      %p127 = scmp.lt.s32.totalorder %s12, 8
      // Predicated region
      $region21: #{tpu_custom_call.1} parent=5 // pred_check
        %p128 = pneg %p127
      $region22: #{tpu_custom_call.1} parent=5 // pred_check_branch
        %130 = sbr.rel (%p128) target = $region24
      $region23: #{tpu_custom_call.1} parent=5 // pred_region
        // Predicated region
        $region25: #{tpu_custom_call.1} parent=23 // pred_check
          %p131 = pneg %p32
        $region26: #{tpu_custom_call.1} parent=23 // pred_check_branch
          %133 = sbr.rel (%p131) target = $region28
        $region27: #{tpu_custom_call.1} parent=23 // pred_region
          %s134 = smul.u32 2, %s12
          %s135 = ssub.s32 15, %s134
          %p136 = scmp.lt.s32.totalorder %s135, 2
          %s137 = scalar_select %p136, %s135, 2
          %s138 = smul.u32 8, %s137
          %p139 = scmp.lt.s32.totalorder %s134, 14
          %s140 = scalar_select %p139, %s134, 14
          %s141 = smul.addr %s140, 8
          %s142 = scalar_lea.vmem %s0, %s141
          %s143 = smul.u32 2, %s12
          %s144 = ssub.s32 15, %s143
          %p145 = scmp.lt.s32.totalorder %s144, 2
          %s146 = scalar_select %p145, %s144, 2
          %s147 = smul.u32 8, %s146
        $region28: #{tpu_custom_call.1} parent=23 // pred_fallthru
          _
      $region24: #{tpu_custom_call.1} parent=5 // pred_fallthru
        _
      %p148 = scmp.le.s32.totalorder 1, %s12
      %p149 = scmp.lt.s32.totalorder %s12, 9
      %p150 = pnand %p148, %p149
      %p151 = pneg %p150
      // Predicated region
      $region29: #{tpu_custom_call.1} parent=5 // pred_check
        _
      $region30: #{tpu_custom_call.1} parent=5 // pred_check_branch
        %153 = sbr.rel (%p150) target = $region32
      $region31: #{tpu_custom_call.1} parent=5 // pred_region
        %s154 = ssub.s32 %s12, 1
        %s155 = smul.u32 2, %s17
        %s156 = ssub.s32 15, %s155
        %p157 = scmp.lt.s32.totalorder %s156, 2
        %s158 = scalar_select %p157, %s156, 2
        %s159 = smul.u32 8, %s158
        %p160 = scmp.lt.s32.totalorder %s155, 14
        %s161 = scalar_select %p160, %s155, 14
        %s162 = smul.addr %s161, 8
        %s163 = scalar_lea.vmem %s0, %s162
        %p164 = pneg %p38
        %p165 = pneg %p35
        %p166 = pneg %p59
        %p167 = pneg %p56
        %p168 = pneg %p80
        %p169 = pneg %p77
        %p170 = pneg %p106
        %p171 = pneg %p103
        %s172 = sand.u32 %s93, 1
        %s173 = scalar_lea.sflag [#allocation3], %s172
        %s174 = sand.u32 %s93, 1
        %s175 = smul.addr %s174, 16
        %s176 = scalar_lea.vmem [#allocation2], %s175
        %s177 = smul.u32 2, %s17
        %s178 = ssub.s32 15, %s177
        %p179 = scmp.lt.s32.totalorder %s178, 2
        %s180 = scalar_select %p179, %s178, 2
        %s181 = smul.u32 8, %s180
        %p182 = scmp.lt.s32.totalorder %s177, 14
        %s183 = scalar_select %p182, %s177, 14
        %s184 = smul.addr %s183, 8
        %s185 = scalar_lea.vmem %s0, %s184
        %s186 = smul.u32 2, %s17
        %s187 = ssub.s32 15, %s186
        %p188 = scmp.lt.s32.totalorder %s187, 2
        %s189 = scalar_select %p188, %s187, 2
        %s190 = smul.u32 8, %s189
        %s191 = smul.u32 2, %s17
        %s192 = ssub.s32 15, %s191
        %p193 = scmp.lt.s32.totalorder %s192, 2
        %s194 = scalar_select %p193, %s192, 2
        %s195 = smul.u32 8, %s194
        %v196 = vld [vmem:[%s185] sm:$0xff]
        %v197 = vld [vmem:[%s185 + $0x8] sm:$0xff]
        %v198 = vld [vmem:[%s1] sm:$0xff]
        %vm199 = vcmask 64512
        %v201 = vsel %vm199, %v196, 0
        %v204 = vsel %vm199, %v197, 0
        %206 = vmatpush.msra.mxu0 0.0
        %207 = vmatpush.msra.mxu0 0.0
        %208 = vmatpush.msra.mxu0 0.0
        %209 = vmatpush.msra.mxu0 0.0
        %210 = vmatpush.msra.mxu0 0.0
        %211 = vmatpush.msra.mxu0 0.0
        %212 = vmatpush.msra.mxu0 0.0
        %213 = vmatpush.msra.mxu0 0.0
        %214 = vmatpush.msra.mxu0 0.0
        %215 = vmatpush.msra.mxu0 0.0
        %216 = vmatpush.msra.mxu0 0.0
        %217 = vmatpush.msra.mxu0 0.0
        %218 = vmatpush.msra.mxu0 0.0
        %219 = vmatpush.msra.mxu0 0.0
        %220 = vmatpush.msra.mxu0 0.0
        %221 = vmatpush.msra.mxu0 %v198
        %222 = vmatmul.f32.gmra.mxu0 %v201
        %v223 = vpop.f32.mrf.mxu0
        %v224 = vadd.f32 0.0, %v223
        %225 = vmatmul.f32.gmra.mxu0 %v204
        %v226 = vpop.f32.mrf.mxu0
        %v227 = vadd.f32 0.0, %v226
        %228 = vdwg.mxu0
        %v229 = vmul.f32 %v224, 0.5
        %v230 = vmul.f32 %v227, 0.5
        %v231 = vfloor.f32 %v229
        %v232 = vfloor.f32 %v230
        %v233 = vmul.f32 %v231, 2.0
        %v234 = vmul.f32 %v232, 2.0
        %v235 = vsub.f32 %v224, %v233
        %v236 = vsub.f32 %v227, %v234
        %v237 = vld [vmem:[%s2] sm:$0x1]
        %v239 = vperm.slane %v237, 0
        %v241 = vsub.f32 %v235, %v239
        %v242 = vsub.f32 %v236, %v239
        %vm243 = vcmp.ge.f32.partialorder %v241, 1.0
        %vm244 = vcmp.ge.f32.partialorder %v242, 1.0
        %v245 = vsub.f32 %v241, 2.0
        %v246 = vsub.f32 %v242, 2.0
        %v247 = vsel %vm243, %v245, %v241
        %v248 = vsel %vm244, %v246, %v242
        %v249 = vmul.f32 %v247, %v247
        %v250 = vmul.f32 %v248, %v248
        %v251 = vmul.f32 %v249, -1.3878953e-07
        %v252 = vmul.f32 %v250, -1.3878953e-07
        %v253 = vadd.f32 %v251, 4.3030695e-06
        %v254 = vadd.f32 %v252, 4.3030695e-06
        %v255 = vmul.f32 %v253, %v249
        %v256 = vmul.f32 %v254, %v250
        %v257 = vadd.f32 %v255, -0.00010463811
        %v258 = vadd.f32 %v256, -0.00010463811
        %v259 = vmul.f32 %v257, %v249
        %v260 = vmul.f32 %v258, %v250
        %v261 = vadd.f32 %v259, 0.0019295743
        %v262 = vadd.f32 %v260, 0.0019295743
        %v263 = vmul.f32 %v261, %v249
        %v264 = vmul.f32 %v262, %v250
        %v265 = vadd.f32 %v263, -0.02580689
        %v266 = vadd.f32 %v264, -0.02580689
        %v267 = vmul.f32 %v265, %v249
        %v268 = vmul.f32 %v266, %v250
        %v269 = vadd.f32 %v267, 0.23533063
        %v270 = vadd.f32 %v268, 0.23533063
        %v271 = vmul.f32 %v269, %v249
        %v272 = vmul.f32 %v270, %v250
        %v273 = vadd.f32 %v271, -1.3352628
        %v274 = vadd.f32 %v272, -1.3352628
        %v275 = vmul.f32 %v273, %v249
        %v276 = vmul.f32 %v274, %v250
        %v277 = vadd.f32 %v275, 4.058712
        %v278 = vadd.f32 %v276, 4.058712
        %v279 = vmul.f32 %v277, %v249
        %v280 = vmul.f32 %v278, %v250
        %v281 = vadd.f32 %v279, -4.934802
        %v282 = vadd.f32 %v280, -4.934802
        %v283 = vmul.f32 %v281, %v249
        %v284 = vmul.f32 %v282, %v250
        %v285 = vadd.f32 %v283, 1.0
        %v286 = vadd.f32 %v284, 1.0
        %287 = vst [vmem:[%s176] sm:$0xff] %v285
        %288 = vst [vmem:[%s176 + $0x8] sm:$0xff] %v286
        %s289 = sand.u32 %s93, 1
        %s290 = scalar_lea.sflag [#allocation3], %s289
        %s291 = sand.u32 %s93, 1
        %s292 = smul.addr %s291, 16
        %s293 = scalar_lea.vmem [#allocation2], %s292
        // Predicated region
        $region33: #{tpu_custom_call.1} parent=31 // pred_check
          %p294 = pneg %p103
        $region34: #{tpu_custom_call.1} parent=31 // pred_check_branch
          %296 = sbr.rel (%p294) target = $region36
        $region35: #{tpu_custom_call.1} parent=31 // pred_region
          %s297 = smul.u32 2, %s17
          %s298 = ssub.s32 15, %s297
          %p299 = scmp.lt.s32.totalorder %s298, 2
          %s300 = scalar_select %p299, %s298, 2
          %s301 = smul.u32 8, %s300
          %s302 = ssub.s32 16, %s301
          %s303 = sshll.u32 %s302, 4
          %304 = vsyncadd %s290, %s303
          %p305 = scmp.ne.s32.totalorder 0, %s301
          %s306 = smul.addr %s297, 8
          %s307 = scalar_lea.hbm %s3, %s306
          %s308 = smul.u32 8, %s300
          %s309 = sshll.u32 %s293, 4
          %s310 = int_to_ptr.vmem [resolvable:$true] %s309
          %s311 = sshll.u32 %s307, 4
          %s312 = int_to_ptr.hbm [resolvable:$true] %s311
          %s313 = sshll.u32 %s308, 4
          %317 = dma.vmem_to_hbm [thread:$0]  (%p305), %s310, %s313, %s312, %s290, 128, 128, 8
        $region36: #{tpu_custom_call.1} parent=31 // pred_fallthru
          _
      $region32: #{tpu_custom_call.1} parent=5 // pred_fallthru
        _
      %p318 = scmp.le.s32.totalorder 2, %s12
      // Predicated region
      $region37: #{tpu_custom_call.1} parent=5 // pred_check
        %p319 = pneg %p318
      $region38: #{tpu_custom_call.1} parent=5 // pred_check_branch
        %321 = sbr.rel (%p319) target = $region40
      $region39: #{tpu_custom_call.1} parent=5 // pred_region
        %s322 = ssub.s32 %s12, 2
        // Predicated region
        $region41: #{tpu_custom_call.1} parent=39 // pred_check
          %p323 = pneg %p109
        $region42: #{tpu_custom_call.1} parent=39 // pred_check_branch
          %325 = sbr.rel (%p323) target = $region44
        $region43: #{tpu_custom_call.1} parent=39 // pred_region
          %s326 = sand.u32 %s94, 1
          %s327 = scalar_lea.sflag [#allocation3], %s326
          %s328 = sand.u32 %s94, 1
          %s329 = smul.addr %s328, 16
          %s330 = scalar_lea.vmem [#allocation2], %s329
          %332 = dma.done %s327, 256
        $region44: #{tpu_custom_call.1} parent=39 // pred_fallthru
          _
      $region40: #{tpu_custom_call.1} parent=5 // pred_fallthru
        _
    $region6: #{tpu_custom_call.1} parent=1 // loop_footer
      %s16 = sadd.s32 1, %s12
    $region7: #{tpu_custom_call.1} parent=1 // loop_footer_branch
      %11 = sbr.rel target = $region3
    $region8: #{tpu_custom_call.1} parent=1 // loop_exit
      _
    %333 = vsyncpa [#allocation3], 1
    %s334 = scalar_lea.sflag [#allocation3], 1
    %335 = vsyncpa %s334, 1

</llo_original>
